<compile_context>
chip_gen: v6e
topology: v6e:2x2x1
jax: 0.10.0
libtpu: 0.0.40
codegen_flags: <defaults>
</compile_context>

<pallas_src>
import jax
import jax.numpy as jnp
from jax.experimental import pallas as pl
from jax.experimental.pallas import tpu as pltpu

N_OBS = 19
N_ACTIONS = 1
H1, H2, H3 = 256, 128, 64          # rl_games-style MLP hidden sizes

OBS_PAD = 32                       # pad 19 -> 32 lanes (bf16-sublane friendly K)
B_BLOCK = 128                      # env rows per grid step (fills MXU rows on v5e)

RAIL_FORCE_RANGE = (-10.0, 10.0)
U_RANGE = (-0.1, 3.0)

# packed parameter slab row layout (one (8, 256) f32 array, every slice lane-0 aligned)
_ROW_B1, _ROW_B2, _ROW_B3, _ROW_WMU, _ROW_MEAN, _ROW_ISTD, _ROW_BMU, _ROW_LSIG = range(8)


def _elu(v):
    # robust ELU: never evaluate exp() on the positive-branch values
    return jnp.where(v > 0.0, v, jnp.exp(jnp.minimum(v, 0.0)) - 1.0)


def policy_kernel(obs_ref, noise_ref, par_ref, w1_ref, w2_ref, w3_ref, out_ref):
    p = par_ref[...]                                   # (8, 256) f32, single DMA
    b1 = p[_ROW_B1:_ROW_B1 + 1, :H1]                   # (1, 256)
    b2 = p[_ROW_B2:_ROW_B2 + 1, :H2]                   # (1, 128)
    b3 = p[_ROW_B3:_ROW_B3 + 1, :H3]                   # (1, 64)
    wmu = p[_ROW_WMU:_ROW_WMU + 1, :H3]                # (1, 64)   mu head as a row
    mean = p[_ROW_MEAN:_ROW_MEAN + 1, :OBS_PAD]        # (1, 32)
    inv_std = p[_ROW_ISTD:_ROW_ISTD + 1, :OBS_PAD]     # (1, 32)   (0 on padded lanes)
    bmu = p[_ROW_BMU, 0]
    log_sigma = p[_ROW_LSIG, 0]

    # running_mean_std input normalization (clamped to +/-5, rl_games default)
    x = obs_ref[...]                                   # (B_BLOCK, 32) f32
    xn = jnp.clip((x - mean) * inv_std, -5.0, 5.0)

    # MLP trunk: bf16 weights / bf16 dot inputs, f32 accumulation, f32 ELU
    h = _elu(jnp.dot(xn.astype(jnp.bfloat16), w1_ref[...],
                     preferred_element_type=jnp.float32) + b1)
    h = _elu(jnp.dot(h.astype(jnp.bfloat16), w2_ref[...],
                     preferred_element_type=jnp.float32) + b2)
    h = _elu(jnp.dot(h.astype(jnp.bfloat16), w3_ref[...],
                     preferred_element_type=jnp.float32) + b3)          # (B, 64)

    # mu head: (64 -> 1) broadcast-multiply + lane reduction (XLU slot)
    mu = jnp.sum(h * wmu, axis=-1, keepdims=True) + bmu                 # (B, 1)

    # stochastic action: mu + exp(log_sigma) * N(0,1)   (is_determenistic=False)
    act = mu + jnp.exp(log_sigma) * noise_ref[...]

    # clip_actions -> clamp [-1,1]; rescale_actions(-1,1) is identity;
    # VineRobotControlModel: numel==1 -> rescale into U_RANGE
    act = jnp.clip(act, -1.0, 1.0)
    u_min, u_max = U_RANGE
    out_ref[...] = (act + 1.0) * ((u_max - u_min) * 0.5) + u_min


def run_policy(obs_pad, noise, params):
    """obs_pad: (B, 32) f32, noise: (B, 1) f32, B a multiple of B_BLOCK."""
    B = obs_pad.shape[0]
    assert B % B_BLOCK == 0
    grid = (B // B_BLOCK,)
    return pl.pallas_call(
        policy_kernel,
        out_shape=jax.ShapeDtypeStruct((B, 1), jnp.float32),
        grid_spec=pltpu.PrefetchScalarGridSpec(
            num_scalar_prefetch=0,
            grid=grid,
            in_specs=[
                pl.BlockSpec((B_BLOCK, OBS_PAD), lambda i: (i, 0)),     # obs rows
                pl.BlockSpec((B_BLOCK, 1), lambda i: (i, 0)),           # noise rows
                # constant index_maps -> param/weight tiles stay VMEM-resident
                pl.BlockSpec((8, 256), lambda i: (0, 0)),               # packed slab
                pl.BlockSpec((OBS_PAD, H1), lambda i: (0, 0)),          # w1 bf16
                pl.BlockSpec((H1, H2), lambda i: (0, 0)),               # w2 bf16
                pl.BlockSpec((H2, H3), lambda i: (0, 0)),               # w3 bf16
            ],
            out_specs=pl.BlockSpec((B_BLOCK, 1), lambda i: (i, 0)),
        ),
        compiler_params=pltpu.CompilerParams(
            dimension_semantics=("parallel",)),                          # v7x 2-TC
    )(obs_pad, noise, params["slab"], params["w1"], params["w2"], params["w3"])


def _get_action(q, qd, tip_pos, tip_vel, target_pos, params, noise_key):
    # glue: build the (1, 19) obs row, pad to one (B_BLOCK, 32) block
    obs = jnp.concatenate([q, qd, tip_pos, tip_vel, target_pos])        # (19,)
    obs_pad = jnp.zeros((B_BLOCK, OBS_PAD), jnp.float32).at[0, :N_OBS].set(obs)
    # TODO(synk): N(0,1) drawn with jax.random (not torch's generator) and passed
    # into the kernel; pltpu's hardware PRNG has no CPU/interpret lowering.
    noise = jax.random.normal(noise_key, (B_BLOCK, 1), jnp.float32)
    out = run_policy(obs_pad, noise, params)                            # (B_BLOCK, 1)
    return out[0, 0]                                                    # scalar u


get_action = jax.jit(_get_action)


def init_params(key):
    ks = jax.random.split(key, 10)
    scale = 0.1
    w1 = jax.random.normal(ks[0], (N_OBS, H1), jnp.float32) * scale
    b1 = jax.random.normal(ks[1], (H1,), jnp.float32) * scale
    w2 = jax.random.normal(ks[2], (H1, H2), jnp.float32) * scale
    b2 = jax.random.normal(ks[3], (H2,), jnp.float32) * scale
    w3 = jax.random.normal(ks[4], (H2, H3), jnp.float32) * scale
    b3 = jax.random.normal(ks[5], (H3,), jnp.float32) * scale
    wmu = jax.random.normal(ks[6], (H3, N_ACTIONS), jnp.float32) * scale
    bmu = jax.random.normal(ks[7], (N_ACTIONS,), jnp.float32) * scale
    log_sigma = jnp.full((N_ACTIONS,), -1.0, jnp.float32)               # log std param
    mean = jax.random.normal(ks[8], (N_OBS,), jnp.float32) * 0.1
    var = jnp.abs(jax.random.normal(ks[9], (N_OBS,), jnp.float32)) + 0.5
    inv_std = 1.0 / jnp.sqrt(var + 1e-5)

    # pack all small params into one (8, 256) f32 slab (single DMA, lane-0 slices)
    slab = jnp.zeros((8, 256), jnp.float32)
    slab = slab.at[_ROW_B1, :H1].set(b1)
    slab = slab.at[_ROW_B2, :H2].set(b2)
    slab = slab.at[_ROW_B3, :H3].set(b3)
    slab = slab.at[_ROW_WMU, :H3].set(wmu[:, 0])
    slab = slab.at[_ROW_MEAN, :N_OBS].set(mean)
    slab = slab.at[_ROW_ISTD, :N_OBS].set(inv_std)   # padded lanes stay 0 -> no effect
    slab = slab.at[_ROW_BMU, 0].set(bmu[0])
    slab = slab.at[_ROW_LSIG, 0].set(log_sigma[0])

    w1_pad = jnp.zeros((OBS_PAD, H1), jnp.float32).at[:N_OBS, :].set(w1)
    return {
        "slab": slab,
        # bf16 trunk weights halve HBM->VMEM weight traffic; MXU-native dtype
        "w1": w1_pad.astype(jnp.bfloat16),            # (32, 256)
        "w2": w2.astype(jnp.bfloat16),                # (256, 128)
        "w3": w3.astype(jnp.bfloat16),                # (128, 64), un-padded
    }


if __name__ == "__main__":
    key = jax.random.PRNGKey(0)
    k_obs, k_par, k_noise = jax.random.split(key, 3)
    ko = jax.random.split(k_obs, 5)

    q = jax.random.normal(ko[0], (5,), jnp.float32) * 0.1
    qd = jax.random.normal(ko[1], (5,), jnp.float32) * 0.1
    tip_pos = jax.random.normal(ko[2], (3,), jnp.float32) * 0.1
    tip_vel = jax.random.normal(ko[3], (3,), jnp.float32) * 0.1
    target_pos = jax.random.normal(ko[4], (3,), jnp.float32) * 0.1

    params = init_params(k_par)

    action = get_action(q, qd, tip_pos, tip_vel, target_pos, params, k_noise)
    action = jax.block_until_ready(action)

    u_min, u_max = U_RANGE
    assert action.shape == () and bool(jnp.isfinite(action))
    assert bool(action >= u_min - 1e-5) and bool(action <= u_max + 1e-5)
    print("KERNEL_OK")
</pallas_src>

<mosaic_0001>
module attributes {stable_mosaic.version = 11 : i64} {
  func.func @policy_kernel(%arg0: i32, %arg1: memref<128x32xf32, #tpu.memory_space<vmem>>, %arg2: memref<128x1xf32, #tpu.memory_space<vmem>>, %arg3: memref<8x256xf32, #tpu.memory_space<vmem>>, %arg4: memref<32x256xbf16, #tpu.memory_space<vmem>>, %arg5: memref<256x128xbf16, #tpu.memory_space<vmem>>, %arg6: memref<128x64xbf16, #tpu.memory_space<vmem>>, %arg7: memref<128x1xf32, #tpu.memory_space<vmem>>) attributes {dimension_semantics = [#tpu.dimension_semantics<parallel>], iteration_bounds = array<i64: 1>, scalar_prefetch = 0 : i64, scratch_operands = 0 : i64, tpu.core_type = #tpu.core_type<tc>, window_params = [{transform_indices = @transform_0, window_bounds = array<i64: 128, 32>}, {transform_indices = @transform_1, window_bounds = array<i64: 128, 1>}, {pipeline_mode = #tpu.pipeline_mode<synchronous>, transform_indices = @transform_2, window_bounds = array<i64: 8, 256>}, {pipeline_mode = #tpu.pipeline_mode<synchronous>, transform_indices = @transform_3, window_bounds = array<i64: 32, 256>}, {pipeline_mode = #tpu.pipeline_mode<synchronous>, transform_indices = @transform_4, window_bounds = array<i64: 256, 128>}, {pipeline_mode = #tpu.pipeline_mode<synchronous>, transform_indices = @transform_5, window_bounds = array<i64: 128, 64>}, {transform_indices = @transform_6, window_bounds = array<i64: 128, 1>}]} {
    %c0 = arith.constant 0 : index
    %c0_0 = arith.constant 0 : index
    %0 = vector.load %arg3[%c0, %c0_0] : memref<8x256xf32, #tpu.memory_space<vmem>>, vector<8x256xf32>
    %1 = vector.extract_strided_slice %0 {offsets = [0, 0], sizes = [1, 256], strides = [1, 1]} : vector<8x256xf32> to vector<1x256xf32>
    %2 = vector.extract_strided_slice %0 {offsets = [1, 0], sizes = [1, 128], strides = [1, 1]} : vector<8x256xf32> to vector<1x128xf32>
    %3 = vector.extract_strided_slice %0 {offsets = [2, 0], sizes = [1, 64], strides = [1, 1]} : vector<8x256xf32> to vector<1x64xf32>
    %4 = vector.extract_strided_slice %0 {offsets = [3, 0], sizes = [1, 64], strides = [1, 1]} : vector<8x256xf32> to vector<1x64xf32>
    %5 = vector.extract_strided_slice %0 {offsets = [4, 0], sizes = [1, 32], strides = [1, 1]} : vector<8x256xf32> to vector<1x32xf32>
    %6 = vector.extract_strided_slice %0 {offsets = [5, 0], sizes = [1, 32], strides = [1, 1]} : vector<8x256xf32> to vector<1x32xf32>
    %7 = vector.extract_strided_slice %0 {offsets = [6, 0], sizes = [1, 1], strides = [1, 1]} : vector<8x256xf32> to vector<1x1xf32>
    %8 = vector.extract %7[0, 0] : f32 from vector<1x1xf32>
    %9 = vector.extract_strided_slice %0 {offsets = [7, 0], sizes = [1, 1], strides = [1, 1]} : vector<8x256xf32> to vector<1x1xf32>
    %10 = vector.extract %9[0, 0] : f32 from vector<1x1xf32>
    %c0_1 = arith.constant 0 : index
    %c0_2 = arith.constant 0 : index
    %11 = vector.load %arg1[%c0_1, %c0_2] : memref<128x32xf32, #tpu.memory_space<vmem>>, vector<128x32xf32>
    %12 = vector.broadcast %5 : vector<1x32xf32> to vector<128x32xf32>
    %13 = arith.subf %11, %12 : vector<128x32xf32>
    %14 = vector.broadcast %6 : vector<1x32xf32> to vector<128x32xf32>
    %15 = arith.mulf %13, %14 : vector<128x32xf32>
    %cst = arith.constant -5.000000e+00 : f32
    %cst_3 = arith.constant 5.000000e+00 : f32
    %16 = vector.broadcast %cst : f32 to vector<128x32xf32>
    %17 = arith.maximumf %16, %15 : vector<128x32xf32>
    %18 = vector.broadcast %cst_3 : f32 to vector<128x32xf32>
    %19 = arith.minimumf %18, %17 : vector<128x32xf32>
    %20 = arith.truncf %19 : vector<128x32xf32> to vector<128x32xbf16>
    %c0_4 = arith.constant 0 : index
    %c0_5 = arith.constant 0 : index
    %21 = vector.load %arg4[%c0_4, %c0_5] : memref<32x256xbf16, #tpu.memory_space<vmem>>, vector<32x256xbf16>
    %cst_6 = arith.constant dense<0.000000e+00> : vector<128x256xf32>
    %22 = tpu.matmul %20, %21, %cst_6 {dimension_numbers = #tpu.dot_dimension_numbers<[1], [0], [0], [1], [0, 0, 1, 1], [], []>} : vector<128x32xbf16>, vector<32x256xbf16>, vector<128x256xf32> -> vector<128x256xf32>
    %23 = vector.broadcast %1 : vector<1x256xf32> to vector<128x256xf32>
    %24 = arith.addf %22, %23 : vector<128x256xf32>
    %cst_7 = arith.constant 0.000000e+00 : f32
    %25 = vector.broadcast %cst_7 : f32 to vector<128x256xf32>
    %26 = arith.cmpf ogt, %24, %25 : vector<128x256xf32>
    %cst_8 = arith.constant 0.000000e+00 : f32
    %27 = vector.broadcast %cst_8 : f32 to vector<128x256xf32>
    %28 = arith.minimumf %24, %27 : vector<128x256xf32>
    %29 = math.exp %28 : vector<128x256xf32>
    %cst_9 = arith.constant 1.000000e+00 : f32
    %30 = vector.broadcast %cst_9 : f32 to vector<128x256xf32>
    %31 = arith.subf %29, %30 : vector<128x256xf32>
    %32 = arith.select %26, %24, %31 : vector<128x256xi1>, vector<128x256xf32>
    %33 = arith.truncf %32 : vector<128x256xf32> to vector<128x256xbf16>
    %c0_10 = arith.constant 0 : index
    %c0_11 = arith.constant 0 : index
    %34 = vector.load %arg5[%c0_10, %c0_11] : memref<256x128xbf16, #tpu.memory_space<vmem>>, vector<256x128xbf16>
    %cst_12 = arith.constant dense<0.000000e+00> : vector<128x128xf32>
    %35 = tpu.matmul %33, %34, %cst_12 {dimension_numbers = #tpu.dot_dimension_numbers<[1], [0], [0], [1], [0, 0, 1, 1], [], []>} : vector<128x256xbf16>, vector<256x128xbf16>, vector<128x128xf32> -> vector<128x128xf32>
    %36 = vector.broadcast %2 : vector<1x128xf32> to vector<128x128xf32>
    %37 = arith.addf %35, %36 : vector<128x128xf32>
    %cst_13 = arith.constant 0.000000e+00 : f32
    %38 = vector.broadcast %cst_13 : f32 to vector<128x128xf32>
    %39 = arith.cmpf ogt, %37, %38 : vector<128x128xf32>
    %cst_14 = arith.constant 0.000000e+00 : f32
    %40 = vector.broadcast %cst_14 : f32 to vector<128x128xf32>
    %41 = arith.minimumf %37, %40 : vector<128x128xf32>
    %42 = math.exp %41 : vector<128x128xf32>
    %cst_15 = arith.constant 1.000000e+00 : f32
    %43 = vector.broadcast %cst_15 : f32 to vector<128x128xf32>
    %44 = arith.subf %42, %43 : vector<128x128xf32>
    %45 = arith.select %39, %37, %44 : vector<128x128xi1>, vector<128x128xf32>
    %46 = arith.truncf %45 : vector<128x128xf32> to vector<128x128xbf16>
    %c0_16 = arith.constant 0 : index
    %c0_17 = arith.constant 0 : index
    %47 = vector.load %arg6[%c0_16, %c0_17] : memref<128x64xbf16, #tpu.memory_space<vmem>>, vector<128x64xbf16>
    %cst_18 = arith.constant dense<0.000000e+00> : vector<128x64xf32>
    %48 = tpu.matmul %46, %47, %cst_18 {dimension_numbers = #tpu.dot_dimension_numbers<[1], [0], [0], [1], [0, 0, 1, 1], [], []>} : vector<128x128xbf16>, vector<128x64xbf16>, vector<128x64xf32> -> vector<128x64xf32>
    %49 = vector.broadcast %3 : vector<1x64xf32> to vector<128x64xf32>
    %50 = arith.addf %48, %49 : vector<128x64xf32>
    %cst_19 = arith.constant 0.000000e+00 : f32
    %51 = vector.broadcast %cst_19 : f32 to vector<128x64xf32>
    %52 = arith.cmpf ogt, %50, %51 : vector<128x64xf32>
    %cst_20 = arith.constant 0.000000e+00 : f32
    %53 = vector.broadcast %cst_20 : f32 to vector<128x64xf32>
    %54 = arith.minimumf %50, %53 : vector<128x64xf32>
    %55 = math.exp %54 : vector<128x64xf32>
    %cst_21 = arith.constant 1.000000e+00 : f32
    %56 = vector.broadcast %cst_21 : f32 to vector<128x64xf32>
    %57 = arith.subf %55, %56 : vector<128x64xf32>
    %58 = arith.select %52, %50, %57 : vector<128x64xi1>, vector<128x64xf32>
    %59 = vector.broadcast %4 : vector<1x64xf32> to vector<128x64xf32>
    %60 = arith.mulf %58, %59 : vector<128x64xf32>
    %cst_22 = arith.constant dense<0.000000e+00> : vector<128xf32>
    %61 = vector.multi_reduction <add>, %60, %cst_22 [1] : vector<128x64xf32> to vector<128xf32>
    %62 = vector.shape_cast %61 : vector<128xf32> to vector<128x1xf32>
    %63 = vector.broadcast %8 : f32 to vector<128x1xf32>
    %64 = arith.addf %62, %63 : vector<128x1xf32>
    %65 = math.exp %10 : f32
    %c0_23 = arith.constant 0 : index
    %c0_24 = arith.constant 0 : index
    %66 = vector.load %arg2[%c0_23, %c0_24] : memref<128x1xf32, #tpu.memory_space<vmem>>, vector<128x1xf32>
    %67 = vector.broadcast %65 : f32 to vector<128x1xf32>
    %68 = arith.mulf %67, %66 : vector<128x1xf32>
    %69 = arith.addf %64, %68 : vector<128x1xf32>
    %cst_25 = arith.constant -1.000000e+00 : f32
    %cst_26 = arith.constant 1.000000e+00 : f32
    %70 = vector.broadcast %cst_25 : f32 to vector<128x1xf32>
    %71 = arith.maximumf %70, %69 : vector<128x1xf32>
    %72 = vector.broadcast %cst_26 : f32 to vector<128x1xf32>
    %73 = arith.minimumf %72, %71 : vector<128x1xf32>
    %cst_27 = arith.constant 1.000000e+00 : f32
    %74 = vector.broadcast %cst_27 : f32 to vector<128x1xf32>
    %75 = arith.addf %73, %74 : vector<128x1xf32>
    %cst_28 = arith.constant 1.550000e+00 : f32
    %76 = vector.broadcast %cst_28 : f32 to vector<128x1xf32>
    %77 = arith.mulf %75, %76 : vector<128x1xf32>
    %cst_29 = arith.constant -1.000000e-01 : f32
    %78 = vector.broadcast %cst_29 : f32 to vector<128x1xf32>
    %79 = arith.addf %77, %78 : vector<128x1xf32>
    %c0_30 = arith.constant 0 : index
    %c0_31 = arith.constant 0 : index
    %80 = vector.load %arg7[%c0_30, %c0_31] : memref<128x1xf32, #tpu.memory_space<vmem>>, vector<128x1xf32>
    tpu.vector_store %arg7[%c0_30, %c0_31], %79 {strides = array<i32>} : memref<128x1xf32, #tpu.memory_space<vmem>>, vector<128x1xf32>,
    return
  }
  func.func @transform_0(%arg0: i32) -> (i32, i32) {
    %c0_i32 = arith.constant 0 : i32
    %c0_i32_0 = arith.constant 0 : i32
    return %arg0, %c0_i32 : i32, i32
  }
  func.func @transform_1(%arg0: i32) -> (i32, i32) {
    %c0_i32 = arith.constant 0 : i32
    %c0_i32_0 = arith.constant 0 : i32
    return %arg0, %c0_i32 : i32, i32
  }
  func.func @transform_2(%arg0: i32) -> (i32, i32) {
    %c0_i32 = arith.constant 0 : i32
    %c0_i32_0 = arith.constant 0 : i32
    %c0_i32_1 = arith.constant 0 : i32
    return %c0_i32, %c0_i32_0 : i32, i32
  }
  func.func @transform_3(%arg0: i32) -> (i32, i32) {
    %c0_i32 = arith.constant 0 : i32
    %c0_i32_0 = arith.constant 0 : i32
    %c0_i32_1 = arith.constant 0 : i32
    return %c0_i32, %c0_i32_0 : i32, i32
  }
  func.func @transform_4(%arg0: i32) -> (i32, i32) {
    %c0_i32 = arith.constant 0 : i32
    %c0_i32_0 = arith.constant 0 : i32
    %c0_i32_1 = arith.constant 0 : i32
    return %c0_i32, %c0_i32_0 : i32, i32
  }
  func.func @transform_5(%arg0: i32) -> (i32, i32) {
    %c0_i32 = arith.constant 0 : i32
    %c0_i32_0 = arith.constant 0 : i32
    %c0_i32_1 = arith.constant 0 : i32
    return %c0_i32, %c0_i32_0 : i32, i32
  }
  func.func @transform_6(%arg0: i32) -> (i32, i32) {
    %c0_i32 = arith.constant 0 : i32
    %c0_i32_0 = arith.constant 0 : i32
    return %arg0, %c0_i32 : i32, i32
  }
}

</mosaic_0001>

<llo_original>
// kernel: _get_action.1
$region0: #{_get_action.1}
  #allocation0 [shape = 'u32[]', space=smem, size = 0x4, offset = 0x4, fixed_abs, tag = 'smem constant byte address 0x4 - core index']
  #allocation1 [shape = 'u32[144,128]{1,0:T(1,128)}', space=vmem, size = 0x12000, scoped, tag = 'internal scratch']
  %s0 = inlined_call_operand.vmem [shape: f32[128,32], index: 0, kind: input, shape index: {}]
  %s1 = inlined_call_operand.vmem [shape: f32[128,1], index: 1, kind: input, shape index: {}]
  %s2 = inlined_call_operand.vmem [shape: f32[8,256], index: 2, kind: input, shape index: {}]
  %s3 = inlined_call_operand.vmem [shape: bf16[32,256], index: 3, kind: input, shape index: {}]
  %s4 = inlined_call_operand.vmem [shape: bf16[256,128], index: 4, kind: input, shape index: {}]
  %s5 = inlined_call_operand.vmem [shape: bf16[128,64], index: 5, kind: input, shape index: {}]
  %s6 = inlined_call_operand.vmem [shape: f32[128,1], index: 6, kind: output, shape index: {}]
  %s7 = sld [smem:[#allocation0]]
  $region34: #{_get_action.1} parent=0
    _
  %s9 = ssub.s32 1, %s7
  %s10 = scalar_select 0, %s9, %s7
  // Predicated region
  $region2: #{_get_action.1} parent=0 // pred_check
    _
  $region3: #{_get_action.1} parent=0 // pred_check_branch
    %12 = sbr.rel (0) target = $region5
  $region4: #{_get_action.1} parent=0 // pred_region
    _
  $region5: #{_get_action.1} parent=0 // pred_fallthru
    _
  // Predicated region
  $region6: #{_get_action.1} parent=0 // pred_check
    _
  $region7: #{_get_action.1} parent=0 // pred_check_branch
    %14 = sbr.rel (0) target = $region9
  $region8: #{_get_action.1} parent=0 // pred_region
    _
  $region9: #{_get_action.1} parent=0 // pred_fallthru
    _
  // Predicated region
  $region10: #{_get_action.1} parent=0 // pred_check
    _
  $region11: #{_get_action.1} parent=0 // pred_check_branch
    %16 = sbr.rel (0) target = $region13
  $region12: #{_get_action.1} parent=0 // pred_region
    _
  $region13: #{_get_action.1} parent=0 // pred_fallthru
    _
  // Predicated region
  $region14: #{_get_action.1} parent=0 // pred_check
    _
  $region15: #{_get_action.1} parent=0 // pred_check_branch
    %18 = sbr.rel (0) target = $region17
  $region16: #{_get_action.1} parent=0 // pred_region
    _
  $region17: #{_get_action.1} parent=0 // pred_fallthru
    _
  // Predicated region
  $region18: #{_get_action.1} parent=0 // pred_check
    _
  $region19: #{_get_action.1} parent=0 // pred_check_branch
    %20 = sbr.rel (0) target = $region21
  $region20: #{_get_action.1} parent=0 // pred_region
    _
  $region21: #{_get_action.1} parent=0 // pred_fallthru
    _
  // Predicated region
  $region22: #{_get_action.1} parent=0 // pred_check
    _
  $region23: #{_get_action.1} parent=0 // pred_check_branch
    %22 = sbr.rel (0) target = $region25
  $region24: #{_get_action.1} parent=0 // pred_region
    _
  $region25: #{_get_action.1} parent=0 // pred_fallthru
    _
  %v24 = vld [vmem:[%s2] sm:$0xff]
  %v25 = vld [vmem:[%s2 + $0x8] sm:$0xff]
  %v26 = vrot.slane %v24, 6
  %s27 = vtos %v26
  %v28 = vrot.slane %v24, 7
  %s29 = vtos %v28
  %v30 = vld [vmem:[%s0] sm:$0xff]
  %v31 = vld [vmem:[%s0 + $0x8] sm:$0xff]
  %v32 = vld [vmem:[%s0 + $0x10] sm:$0xff]
  %v33 = vld [vmem:[%s0 + $0x18] sm:$0xff]
  %v34 = vld [vmem:[%s0 + $0x20] sm:$0xff]
  %v35 = vld [vmem:[%s0 + $0x28] sm:$0xff]
  %v36 = vld [vmem:[%s0 + $0x30] sm:$0xff]
  %v37 = vld [vmem:[%s0 + $0x38] sm:$0xff]
  %v38 = vld [vmem:[%s0 + $0x40] sm:$0xff]
  %v39 = vld [vmem:[%s0 + $0x48] sm:$0xff]
  %v40 = vld [vmem:[%s0 + $0x50] sm:$0xff]
  %v41 = vld [vmem:[%s0 + $0x58] sm:$0xff]
  %v42 = vld [vmem:[%s0 + $0x60] sm:$0xff]
  %v43 = vld [vmem:[%s0 + $0x68] sm:$0xff]
  %v44 = vld [vmem:[%s0 + $0x70] sm:$0xff]
  %v45 = vld [vmem:[%s0 + $0x78] sm:$0xff]
  %v46 = vlaneseq
  %v47 = vshrl.u32 %v46, 7
  %v48 = vsub.s32 4, %v47
  %v49 = vrot.slane %v24, %v48
  %v50 = vsub.f32 %v30, %v49
  %v51 = vsub.f32 %v31, %v49
  %v52 = vsub.f32 %v32, %v49
  %v53 = vsub.f32 %v33, %v49
  %v54 = vsub.f32 %v34, %v49
  %v55 = vsub.f32 %v35, %v49
  %v56 = vsub.f32 %v36, %v49
  %v57 = vsub.f32 %v37, %v49
  %v58 = vsub.f32 %v38, %v49
  %v59 = vsub.f32 %v39, %v49
  %v60 = vsub.f32 %v40, %v49
  %v61 = vsub.f32 %v41, %v49
  %v62 = vsub.f32 %v42, %v49
  %v63 = vsub.f32 %v43, %v49
  %v64 = vsub.f32 %v44, %v49
  %v65 = vsub.f32 %v45, %v49
  %v66 = vlaneseq
  %v67 = vshrl.u32 %v66, 7
  %v68 = vsub.s32 5, %v67
  %v69 = vrot.slane %v24, %v68
  %v70 = vmul.f32 %v50, %v69
  %v71 = vmul.f32 %v51, %v69
  %v72 = vmul.f32 %v52, %v69
  %v73 = vmul.f32 %v53, %v69
  %v74 = vmul.f32 %v54, %v69
  %v75 = vmul.f32 %v55, %v69
  %v76 = vmul.f32 %v56, %v69
  %v77 = vmul.f32 %v57, %v69
  %v78 = vmul.f32 %v58, %v69
  %v79 = vmul.f32 %v59, %v69
  %v80 = vmul.f32 %v60, %v69
  %v81 = vmul.f32 %v61, %v69
  %v82 = vmul.f32 %v62, %v69
  %v83 = vmul.f32 %v63, %v69
  %v84 = vmul.f32 %v64, %v69
  %v85 = vmul.f32 %v65, %v69
  %v86 = vmax.f32 %v70, -5.0
  %v87 = vmax.f32 %v71, -5.0
  %v88 = vmax.f32 %v72, -5.0
  %v89 = vmax.f32 %v73, -5.0
  %v90 = vmax.f32 %v74, -5.0
  %v91 = vmax.f32 %v75, -5.0
  %v92 = vmax.f32 %v76, -5.0
  %v93 = vmax.f32 %v77, -5.0
  %v94 = vmax.f32 %v78, -5.0
  %v95 = vmax.f32 %v79, -5.0
  %v96 = vmax.f32 %v80, -5.0
  %v97 = vmax.f32 %v81, -5.0
  %v98 = vmax.f32 %v82, -5.0
  %v99 = vmax.f32 %v83, -5.0
  %v100 = vmax.f32 %v84, -5.0
  %v101 = vmax.f32 %v85, -5.0
  %v102 = vmin.f32 %v86, 5.0
  %v103 = vmin.f32 %v87, 5.0
  %v104 = vmin.f32 %v88, 5.0
  %v105 = vmin.f32 %v89, 5.0
  %v106 = vmin.f32 %v90, 5.0
  %v107 = vmin.f32 %v91, 5.0
  %v108 = vmin.f32 %v92, 5.0
  %v109 = vmin.f32 %v93, 5.0
  %v110 = vmin.f32 %v94, 5.0
  %v111 = vmin.f32 %v95, 5.0
  %v112 = vmin.f32 %v96, 5.0
  %v113 = vmin.f32 %v97, 5.0
  %v114 = vmin.f32 %v98, 5.0
  %v115 = vmin.f32 %v99, 5.0
  %v116 = vmin.f32 %v100, 5.0
  %v117 = vmin.f32 %v101, 5.0
  %v118 = vpack.c.bf16 %v103, %v102
  %v119 = vpack.c.bf16 %v105, %v104
  %v120 = vpack.c.bf16 %v107, %v106
  %v121 = vpack.c.bf16 %v109, %v108
  %v122 = vpack.c.bf16 %v111, %v110
  %v123 = vpack.c.bf16 %v113, %v112
  %v124 = vpack.c.bf16 %v115, %v114
  %v125 = vpack.c.bf16 %v117, %v116
  %v126 = vld [vmem:[%s3] sm:$0xff]
  %v127 = vld [vmem:[%s3 + $0x8] sm:$0xff]
  %v128 = vld [vmem:[%s3 + $0x10] sm:$0xff]
  %v129 = vld [vmem:[%s3 + $0x18] sm:$0xff]
  %v130 = vlaneseq
  %v131 = vshrl.u32 %v130, 7
  %v132 = vsub.s32 0, %v131
  %v133 = vrot.slane %v24, %v132
  %v134 = vlaneseq
  %v135 = vshrl.u32 %v134, 7
  %v136 = vsub.s32 0, %v135
  %v137 = vrot.slane %v25, %v136
  %v142 = vunpack.c.l.b16 %v126
  %v143 = vunpack.c.h.b16 %v126
  %v144 = vunpack.c.l.b16 %v127
  %v145 = vunpack.c.h.b16 %v127
  %v146 = vunpack.c.l.b16 %v128
  %v147 = vunpack.c.h.b16 %v128
  %v148 = vunpack.c.l.b16 %v129
  %v149 = vunpack.c.h.b16 %v129
  %v150 = vpack.c.b16 %v144, %v142
  %v151 = vpack.c.b16 %v145, %v143
  %v152 = vpack.c.b16 %v148, %v146
  %v153 = vpack.c.b16 %v149, %v147
  %vm158 = vcmask 261120
  %v160 = vsel %vm158, %v118, 0
  %v163 = vsel %vm158, %v119, 0
  %v166 = vsel %vm158, %v120, 0
  %v169 = vsel %vm158, %v121, 0
  %v172 = vsel %vm158, %v122, 0
  %v175 = vsel %vm158, %v123, 0
  %v178 = vsel %vm158, %v124, 0
  %v181 = vsel %vm158, %v125, 0
  %183 = vmatprep.subr.bf16.mxu0 0
  %184 = vmatpush1.bf16.msra.mxu0 0
  %185 = vmatprep.subr.bf16.mxu0 0
  %186 = vmatpush1.bf16.msra.mxu0 0
  %187 = vmatprep.subr.bf16.mxu0 0
  %188 = vmatpush1.bf16.msra.mxu0 0
  %189 = vmatprep.subr.bf16.mxu0 0
  %190 = vmatpush1.bf16.msra.mxu0 0
  %191 = vmatprep.subr.bf16.mxu0 0
  %192 = vmatpush1.bf16.msra.mxu0 0
  %193 = vmatprep.subr.bf16.mxu0 0
  %194 = vmatpush1.bf16.msra.mxu0 0
  %195 = vmatprep.subr.bf16.mxu0 %v153
  %196 = vmatpush1.bf16.msra.mxu0 %v152
  %197 = vmatprep.subr.bf16.mxu0 %v151
  %198 = vmatpush1.bf16.msra.mxu0 %v150
  %199 = vmatprep.subr.bf16.mxu0 0
  %200 = vmatpush2.bf16.msra.mxu0 0
  %201 = vmatprep.subr.bf16.mxu0 0
  %202 = vmatpush2.bf16.msra.mxu0 0
  %203 = vmatprep.subr.bf16.mxu0 0
  %204 = vmatpush2.bf16.msra.mxu0 0
  %205 = vmatprep.subr.bf16.mxu0 0
  %206 = vmatpush2.bf16.msra.mxu0 0
  %207 = vmatprep.subr.bf16.mxu0 0
  %208 = vmatpush2.bf16.msra.mxu0 0
  %209 = vmatprep.subr.bf16.mxu0 0
  %210 = vmatpush2.bf16.msra.mxu0 0
  %211 = vmatprep.subr.bf16.mxu0 0
  %212 = vmatpush2.bf16.msra.mxu0 0
  %213 = vmatprep.subr.bf16.mxu0 0
  %214 = vmatpush2.bf16.msra.mxu0 0
  %215 = vmatprep.mubr.bf16.mxu0 0
  %216 = vmatmul.mubr.bf16.gmra.mxu0 %v160
  %v217 = vpop.f32.mrf.mxu0
  %v218 = vadd.f32 %v133, %v217
  %v219 = vpop.f32.mrf.mxu0
  %v220 = vadd.f32 %v137, %v219
  %v221 = vpop.f32.mrf.mxu0
  %v222 = vadd.f32 %v133, %v221
  %v223 = vpop.f32.mrf.mxu0
  %v224 = vadd.f32 %v137, %v223
  %225 = vmatprep.mubr.bf16.mxu0 0
  %226 = vmatmul.mubr.bf16.gmra.mxu0 %v163
  %v227 = vpop.f32.mrf.mxu0
  %v228 = vadd.f32 %v133, %v227
  %v229 = vpop.f32.mrf.mxu0
  %v230 = vadd.f32 %v137, %v229
  %v231 = vpop.f32.mrf.mxu0
  %v232 = vadd.f32 %v133, %v231
  %v233 = vpop.f32.mrf.mxu0
  %v234 = vadd.f32 %v137, %v233
  %235 = vmatprep.mubr.bf16.mxu0 0
  %236 = vmatmul.mubr.bf16.gmra.mxu0 %v166
  %v237 = vpop.f32.mrf.mxu0
  %v238 = vadd.f32 %v133, %v237
  %v239 = vpop.f32.mrf.mxu0
  %v240 = vadd.f32 %v137, %v239
  %v241 = vpop.f32.mrf.mxu0
  %v242 = vadd.f32 %v133, %v241
  %v243 = vpop.f32.mrf.mxu0
  %v244 = vadd.f32 %v137, %v243
  %245 = vmatprep.mubr.bf16.mxu0 0
  %246 = vmatmul.mubr.bf16.gmra.mxu0 %v169
  %v247 = vpop.f32.mrf.mxu0
  %v248 = vadd.f32 %v133, %v247
  %v249 = vpop.f32.mrf.mxu0
  %v250 = vadd.f32 %v137, %v249
  %v251 = vpop.f32.mrf.mxu0
  %v252 = vadd.f32 %v133, %v251
  %v253 = vpop.f32.mrf.mxu0
  %v254 = vadd.f32 %v137, %v253
  %255 = vmatprep.mubr.bf16.mxu0 0
  %256 = vmatmul.mubr.bf16.gmra.mxu0 %v172
  %v257 = vpop.f32.mrf.mxu0
  %v258 = vadd.f32 %v133, %v257
  %v259 = vpop.f32.mrf.mxu0
  %v260 = vadd.f32 %v137, %v259
  %v261 = vpop.f32.mrf.mxu0
  %v262 = vadd.f32 %v133, %v261
  %v263 = vpop.f32.mrf.mxu0
  %v264 = vadd.f32 %v137, %v263
  %265 = vmatprep.mubr.bf16.mxu0 0
  %266 = vmatmul.mubr.bf16.gmra.mxu0 %v175
  %v267 = vpop.f32.mrf.mxu0
  %v268 = vadd.f32 %v133, %v267
  %v269 = vpop.f32.mrf.mxu0
  %v270 = vadd.f32 %v137, %v269
  %v271 = vpop.f32.mrf.mxu0
  %v272 = vadd.f32 %v133, %v271
  %v273 = vpop.f32.mrf.mxu0
  %v274 = vadd.f32 %v137, %v273
  %275 = vmatprep.mubr.bf16.mxu0 0
  %276 = vmatmul.mubr.bf16.gmra.mxu0 %v178
  %v277 = vpop.f32.mrf.mxu0
  %v278 = vadd.f32 %v133, %v277
  %v279 = vpop.f32.mrf.mxu0
  %v280 = vadd.f32 %v137, %v279
  %v281 = vpop.f32.mrf.mxu0
  %v282 = vadd.f32 %v133, %v281
  %v283 = vpop.f32.mrf.mxu0
  %v284 = vadd.f32 %v137, %v283
  %285 = vmatprep.mubr.bf16.mxu0 0
  %286 = vmatmul.mubr.bf16.gmra.mxu0 %v181
  %v287 = vpop.f32.mrf.mxu0
  %v288 = vadd.f32 %v133, %v287
  %v289 = vpop.f32.mrf.mxu0
  %v290 = vadd.f32 %v137, %v289
  %v291 = vpop.f32.mrf.mxu0
  %v292 = vadd.f32 %v133, %v291
  %v293 = vpop.f32.mrf.mxu0
  %v294 = vadd.f32 %v137, %v293
  %295 = vdwg.mxu0
  %vm296 = vcmp.gt.f32.partialorder %v218, 0.0
  %vm297 = vcmp.gt.f32.partialorder %v220, 0.0
  %vm298 = vcmp.gt.f32.partialorder %v222, 0.0
  %vm299 = vcmp.gt.f32.partialorder %v224, 0.0
  %vm300 = vcmp.gt.f32.partialorder %v228, 0.0
  %vm301 = vcmp.gt.f32.partialorder %v230, 0.0
  %vm302 = vcmp.gt.f32.partialorder %v232, 0.0
  %vm303 = vcmp.gt.f32.partialorder %v234, 0.0
  %vm304 = vcmp.gt.f32.partialorder %v238, 0.0
  %vm305 = vcmp.gt.f32.partialorder %v240, 0.0
  %vm306 = vcmp.gt.f32.partialorder %v242, 0.0
  %vm307 = vcmp.gt.f32.partialorder %v244, 0.0
  %vm308 = vcmp.gt.f32.partialorder %v248, 0.0
  %vm309 = vcmp.gt.f32.partialorder %v250, 0.0
  %vm310 = vcmp.gt.f32.partialorder %v252, 0.0
  %vm311 = vcmp.gt.f32.partialorder %v254, 0.0
  %vm312 = vcmp.gt.f32.partialorder %v258, 0.0
  %vm313 = vcmp.gt.f32.partialorder %v260, 0.0
  %vm314 = vcmp.gt.f32.partialorder %v262, 0.0
  %vm315 = vcmp.gt.f32.partialorder %v264, 0.0
  %vm316 = vcmp.gt.f32.partialorder %v268, 0.0
  %vm317 = vcmp.gt.f32.partialorder %v270, 0.0
  %vm318 = vcmp.gt.f32.partialorder %v272, 0.0
  %vm319 = vcmp.gt.f32.partialorder %v274, 0.0
  %vm320 = vcmp.gt.f32.partialorder %v278, 0.0
  %vm321 = vcmp.gt.f32.partialorder %v280, 0.0
  %vm322 = vcmp.gt.f32.partialorder %v282, 0.0
  %vm323 = vcmp.gt.f32.partialorder %v284, 0.0
  %vm324 = vcmp.gt.f32.partialorder %v288, 0.0
  %vm325 = vcmp.gt.f32.partialorder %v290, 0.0
  %vm326 = vcmp.gt.f32.partialorder %v292, 0.0
  %vm327 = vcmp.gt.f32.partialorder %v294, 0.0
  %v328 = vmin.f32 %v218, 0.0
  %v329 = vmin.f32 %v220, 0.0
  %v330 = vmin.f32 %v222, 0.0
  %v331 = vmin.f32 %v224, 0.0
  %v332 = vmin.f32 %v228, 0.0
  %v333 = vmin.f32 %v230, 0.0
  %v334 = vmin.f32 %v232, 0.0
  %v335 = vmin.f32 %v234, 0.0
  %v336 = vmin.f32 %v238, 0.0
  %v337 = vmin.f32 %v240, 0.0
  %v338 = vmin.f32 %v242, 0.0
  %v339 = vmin.f32 %v244, 0.0
  %v340 = vmin.f32 %v248, 0.0
  %v341 = vmin.f32 %v250, 0.0
  %v342 = vmin.f32 %v252, 0.0
  %v343 = vmin.f32 %v254, 0.0
  %v344 = vmin.f32 %v258, 0.0
  %v345 = vmin.f32 %v260, 0.0
  %v346 = vmin.f32 %v262, 0.0
  %v347 = vmin.f32 %v264, 0.0
  %v348 = vmin.f32 %v268, 0.0
  %v349 = vmin.f32 %v270, 0.0
  %v350 = vmin.f32 %v272, 0.0
  %v351 = vmin.f32 %v274, 0.0
  %v352 = vmin.f32 %v278, 0.0
  %v353 = vmin.f32 %v280, 0.0
  %v354 = vmin.f32 %v282, 0.0
  %v355 = vmin.f32 %v284, 0.0
  %v356 = vmin.f32 %v288, 0.0
  %v357 = vmin.f32 %v290, 0.0
  %v358 = vmin.f32 %v292, 0.0
  %v359 = vmin.f32 %v294, 0.0
  %v360 = vmul.f32 %v328, 1.442695
  %v361 = vpow.pop %v360
  %v362 = vmul.f32 %v329, 1.442695
  %v363 = vpow.pop %v362
  %v364 = vmul.f32 %v330, 1.442695
  %v365 = vpow.pop %v364
  %v366 = vmul.f32 %v331, 1.442695
  %v367 = vpow.pop %v366
  %v368 = vmul.f32 %v332, 1.442695
  %v369 = vpow.pop %v368
  %v370 = vmul.f32 %v333, 1.442695
  %v371 = vpow.pop %v370
  %v372 = vmul.f32 %v334, 1.442695
  %v373 = vpow.pop %v372
  %v374 = vmul.f32 %v335, 1.442695
  %v375 = vpow.pop %v374
  %v376 = vmul.f32 %v336, 1.442695
  %v377 = vpow.pop %v376
  %v378 = vmul.f32 %v337, 1.442695
  %v379 = vpow.pop %v378
  %v380 = vmul.f32 %v338, 1.442695
  %v381 = vpow.pop %v380
  %v382 = vmul.f32 %v339, 1.442695
  %v383 = vpow.pop %v382
  %v384 = vmul.f32 %v340, 1.442695
  %v385 = vpow.pop %v384
  %v386 = vmul.f32 %v341, 1.442695
  %v387 = vpow.pop %v386
  %v388 = vmul.f32 %v342, 1.442695
  %v389 = vpow.pop %v388
  %v390 = vmul.f32 %v343, 1.442695
  %v391 = vpow.pop %v390
  %v392 = vmul.f32 %v344, 1.442695
  %v393 = vpow.pop %v392
  %v394 = vmul.f32 %v345, 1.442695
  %v395 = vpow.pop %v394
  %v396 = vmul.f32 %v346, 1.442695
  %v397 = vpow.pop %v396
  %v398 = vmul.f32 %v347, 1.442695
  %v399 = vpow.pop %v398
  %v400 = vmul.f32 %v348, 1.442695
  %v401 = vpow.pop %v400
  %v402 = vmul.f32 %v349, 1.442695
  %v403 = vpow.pop %v402
  %v404 = vmul.f32 %v350, 1.442695
  %v405 = vpow.pop %v404
  %v406 = vmul.f32 %v351, 1.442695
  %v407 = vpow.pop %v406
  %v408 = vmul.f32 %v352, 1.442695
  %v409 = vpow.pop %v408
  %v410 = vmul.f32 %v353, 1.442695
  %v411 = vpow.pop %v410
  %v412 = vmul.f32 %v354, 1.442695
  %v413 = vpow.pop %v412
  %v414 = vmul.f32 %v355, 1.442695
  %v415 = vpow.pop %v414
  %v416 = vmul.f32 %v356, 1.442695
  %v417 = vpow.pop %v416
  %v418 = vmul.f32 %v357, 1.442695
  %v419 = vpow.pop %v418
  %v420 = vmul.f32 %v358, 1.442695
  %v421 = vpow.pop %v420
  %v422 = vmul.f32 %v359, 1.442695
  %v423 = vpow.pop %v422
  %v424 = vsub.f32 %v361, 1.0
  %v425 = vsub.f32 %v363, 1.0
  %v426 = vsub.f32 %v365, 1.0
  %v427 = vsub.f32 %v367, 1.0
  %v428 = vsub.f32 %v369, 1.0
  %v429 = vsub.f32 %v371, 1.0
  %v430 = vsub.f32 %v373, 1.0
  %v431 = vsub.f32 %v375, 1.0
  %v432 = vsub.f32 %v377, 1.0
  %v433 = vsub.f32 %v379, 1.0
  %v434 = vsub.f32 %v381, 1.0
  %v435 = vsub.f32 %v383, 1.0
  %v436 = vsub.f32 %v385, 1.0
  %v437 = vsub.f32 %v387, 1.0
  %v438 = vsub.f32 %v389, 1.0
  %v439 = vsub.f32 %v391, 1.0
  %v440 = vsub.f32 %v393, 1.0
  %v441 = vsub.f32 %v395, 1.0
  %v442 = vsub.f32 %v397, 1.0
  %v443 = vsub.f32 %v399, 1.0
  %v444 = vsub.f32 %v401, 1.0
  %v445 = vsub.f32 %v403, 1.0
  %v446 = vsub.f32 %v405, 1.0
  %v447 = vsub.f32 %v407, 1.0
  %v448 = vsub.f32 %v409, 1.0
  %v449 = vsub.f32 %v411, 1.0
  %v450 = vsub.f32 %v413, 1.0
  %v451 = vsub.f32 %v415, 1.0
  %v452 = vsub.f32 %v417, 1.0
  %v453 = vsub.f32 %v419, 1.0
  %v454 = vsub.f32 %v421, 1.0
  %v455 = vsub.f32 %v423, 1.0
  %v456 = vsel %vm296, %v218, %v424
  %v457 = vsel %vm297, %v220, %v425
  %v458 = vsel %vm298, %v222, %v426
  %v459 = vsel %vm299, %v224, %v427
  %v460 = vsel %vm300, %v228, %v428
  %v461 = vsel %vm301, %v230, %v429
  %v462 = vsel %vm302, %v232, %v430
  %v463 = vsel %vm303, %v234, %v431
  %v464 = vsel %vm304, %v238, %v432
  %v465 = vsel %vm305, %v240, %v433
  %v466 = vsel %vm306, %v242, %v434
  %v467 = vsel %vm307, %v244, %v435
  %v468 = vsel %vm308, %v248, %v436
  %v469 = vsel %vm309, %v250, %v437
  %v470 = vsel %vm310, %v252, %v438
  %v471 = vsel %vm311, %v254, %v439
  %v472 = vsel %vm312, %v258, %v440
  %v473 = vsel %vm313, %v260, %v441
  %v474 = vsel %vm314, %v262, %v442
  %v475 = vsel %vm315, %v264, %v443
  %v476 = vsel %vm316, %v268, %v444
  %v477 = vsel %vm317, %v270, %v445
  %v478 = vsel %vm318, %v272, %v446
  %v479 = vsel %vm319, %v274, %v447
  %v480 = vsel %vm320, %v278, %v448
  %v481 = vsel %vm321, %v280, %v449
  %v482 = vsel %vm322, %v282, %v450
  %v483 = vsel %vm323, %v284, %v451
  %v484 = vsel %vm324, %v288, %v452
  %v485 = vsel %vm325, %v290, %v453
  %v486 = vsel %vm326, %v292, %v454
  %v487 = vsel %vm327, %v294, %v455
  %v488 = vpack.c.bf16 %v458, %v456
  %v489 = vpack.c.bf16 %v459, %v457
  %v490 = vpack.c.bf16 %v462, %v460
  %v491 = vpack.c.bf16 %v463, %v461
  %v492 = vpack.c.bf16 %v466, %v464
  %v493 = vpack.c.bf16 %v467, %v465
  %v494 = vpack.c.bf16 %v470, %v468
  %v495 = vpack.c.bf16 %v471, %v469
  %v496 = vpack.c.bf16 %v474, %v472
  %v497 = vpack.c.bf16 %v475, %v473
  %v498 = vpack.c.bf16 %v478, %v476
  %v499 = vpack.c.bf16 %v479, %v477
  %v500 = vpack.c.bf16 %v482, %v480
  %v501 = vpack.c.bf16 %v483, %v481
  %v502 = vpack.c.bf16 %v486, %v484
  %v503 = vpack.c.bf16 %v487, %v485
  %v504 = vld [vmem:[%s4] sm:$0xf]
  %v505 = vld [vmem:[%s4 + $0x4] sm:$0xf]
  %v506 = vld [vmem:[%s4 + $0x8] sm:$0xf]
  %v507 = vld [vmem:[%s4 + $0xc] sm:$0xf]
  %v508 = vld [vmem:[%s4 + $0x10] sm:$0xf]
  %v509 = vld [vmem:[%s4 + $0x14] sm:$0xf]
  %v510 = vld [vmem:[%s4 + $0x18] sm:$0xf]
  %v511 = vld [vmem:[%s4 + $0x1c] sm:$0xf]
  %v512 = vld [vmem:[%s4 + $0x20] sm:$0xf]
  %v513 = vld [vmem:[%s4 + $0x24] sm:$0xf]
  %v514 = vld [vmem:[%s4 + $0x28] sm:$0xf]
  %v515 = vld [vmem:[%s4 + $0x2c] sm:$0xf]
  %v516 = vld [vmem:[%s4 + $0x30] sm:$0xf]
  %v517 = vld [vmem:[%s4 + $0x34] sm:$0xf]
  %v518 = vld [vmem:[%s4 + $0x38] sm:$0xf]
  %v519 = vld [vmem:[%s4 + $0x3c] sm:$0xf]
  %v520 = vld [vmem:[%s4 + $0x40] sm:$0xf]
  %v521 = vld [vmem:[%s4 + $0x44] sm:$0xf]
  %v522 = vld [vmem:[%s4 + $0x48] sm:$0xf]
  %v523 = vld [vmem:[%s4 + $0x4c] sm:$0xf]
  %v524 = vld [vmem:[%s4 + $0x50] sm:$0xf]
  %v525 = vld [vmem:[%s4 + $0x54] sm:$0xf]
  %v526 = vld [vmem:[%s4 + $0x58] sm:$0xf]
  %v527 = vld [vmem:[%s4 + $0x5c] sm:$0xf]
  %v528 = vld [vmem:[%s4 + $0x60] sm:$0xf]
  %v529 = vld [vmem:[%s4 + $0x64] sm:$0xf]
  %v530 = vld [vmem:[%s4 + $0x68] sm:$0xf]
  %v531 = vld [vmem:[%s4 + $0x6c] sm:$0xf]
  %v532 = vld [vmem:[%s4 + $0x70] sm:$0xf]
  %v533 = vld [vmem:[%s4 + $0x74] sm:$0xf]
  %v534 = vld [vmem:[%s4 + $0x78] sm:$0xf]
  %v535 = vld [vmem:[%s4 + $0x7c] sm:$0xf]
  %v536 = vlaneseq
  %v537 = vshrl.u32 %v536, 7
  %v538 = vsub.s32 1, %v537
  %v539 = vrot.slane %v24, %v538
  %v572 = vunpack.c.l.b16 %v504
  %v573 = vunpack.c.l.b16 %v505
  %v574 = vunpack.c.l.b16 %v506
  %v575 = vunpack.c.l.b16 %v507
  %v576 = vunpack.c.l.b16 %v508
  %v577 = vunpack.c.l.b16 %v509
  %v578 = vunpack.c.l.b16 %v510
  %v579 = vunpack.c.l.b16 %v511
  %v580 = vunpack.c.l.b16 %v512
  %v581 = vunpack.c.l.b16 %v513
  %v582 = vunpack.c.l.b16 %v514
  %v583 = vunpack.c.l.b16 %v515
  %v584 = vunpack.c.l.b16 %v516
  %v585 = vunpack.c.l.b16 %v517
  %v586 = vunpack.c.l.b16 %v518
  %v587 = vunpack.c.l.b16 %v519
  %v588 = vunpack.c.l.b16 %v520
  %v589 = vunpack.c.l.b16 %v521
  %v590 = vunpack.c.l.b16 %v522
  %v591 = vunpack.c.l.b16 %v523
  %v592 = vunpack.c.l.b16 %v524
  %v593 = vunpack.c.l.b16 %v525
  %v594 = vunpack.c.l.b16 %v526
  %v595 = vunpack.c.l.b16 %v527
  %v596 = vunpack.c.l.b16 %v528
  %v597 = vunpack.c.l.b16 %v529
  %v598 = vunpack.c.l.b16 %v530
  %v599 = vunpack.c.l.b16 %v531
  %v600 = vunpack.c.l.b16 %v532
  %v601 = vunpack.c.l.b16 %v533
  %v602 = vunpack.c.l.b16 %v534
  %v603 = vunpack.c.l.b16 %v535
  %v604 = vpack.c.b16 %v573, %v572
  %v605 = vpack.c.b16 %v575, %v574
  %v606 = vpack.c.b16 %v577, %v576
  %v607 = vpack.c.b16 %v579, %v578
  %v608 = vpack.c.b16 %v581, %v580
  %v609 = vpack.c.b16 %v583, %v582
  %v610 = vpack.c.b16 %v585, %v584
  %v611 = vpack.c.b16 %v587, %v586
  %v612 = vpack.c.b16 %v589, %v588
  %v613 = vpack.c.b16 %v591, %v590
  %v614 = vpack.c.b16 %v593, %v592
  %v615 = vpack.c.b16 %v595, %v594
  %v616 = vpack.c.b16 %v597, %v596
  %v617 = vpack.c.b16 %v599, %v598
  %v618 = vpack.c.b16 %v601, %v600
  %v619 = vpack.c.b16 %v603, %v602
  %636 = vmatprep.subr.bf16.mxu0 0
  %637 = vmatpush1.bf16.msra.mxu0 %v611
  %638 = vmatprep.subr.bf16.mxu0 0
  %639 = vmatpush1.bf16.msra.mxu0 %v610
  %640 = vmatprep.subr.bf16.mxu0 0
  %641 = vmatpush1.bf16.msra.mxu0 %v609
  %642 = vmatprep.subr.bf16.mxu0 0
  %643 = vmatpush1.bf16.msra.mxu0 %v608
  %644 = vmatprep.subr.bf16.mxu0 0
  %645 = vmatpush1.bf16.msra.mxu0 %v607
  %646 = vmatprep.subr.bf16.mxu0 0
  %647 = vmatpush1.bf16.msra.mxu0 %v606
  %648 = vmatprep.subr.bf16.mxu0 0
  %649 = vmatpush1.bf16.msra.mxu0 %v605
  %650 = vmatprep.subr.bf16.mxu0 0
  %651 = vmatpush1.bf16.msra.mxu0 %v604
  %652 = vmatprep.subr.bf16.mxu0 0
  %653 = vmatpush2.bf16.msra.mxu0 %v619
  %654 = vmatprep.subr.bf16.mxu0 0
  %655 = vmatpush2.bf16.msra.mxu0 %v618
  %656 = vmatprep.subr.bf16.mxu0 0
  %657 = vmatpush2.bf16.msra.mxu0 %v617
  %658 = vmatprep.subr.bf16.mxu0 0
  %659 = vmatpush2.bf16.msra.mxu0 %v616
  %660 = vmatprep.subr.bf16.mxu0 0
  %661 = vmatpush2.bf16.msra.mxu0 %v615
  %662 = vmatprep.subr.bf16.mxu0 0
  %663 = vmatpush2.bf16.msra.mxu0 %v614
  %664 = vmatprep.subr.bf16.mxu0 0
  %665 = vmatpush2.bf16.msra.mxu0 %v613
  %666 = vmatprep.subr.bf16.mxu0 0
  %667 = vmatpush2.bf16.msra.mxu0 %v612
  %668 = vmatprep.mubr.bf16.mxu0 %v489
  %669 = vmatmul.mubr.bf16.gmra.mxu0 %v488
  %v670 = vpop.f32.mrf.mxu0
  %v671 = vadd.f32 %v539, %v670
  %v672 = vpop.f32.mrf.mxu0
  %v673 = vpop.f32.mrf.mxu0
  %v674 = vadd.f32 %v539, %v673
  %v675 = vpop.f32.mrf.mxu0
  %676 = vmatprep.mubr.bf16.mxu0 %v491
  %677 = vmatmul.mubr.bf16.gmra.mxu0 %v490
  %v678 = vpop.f32.mrf.mxu0
  %v679 = vadd.f32 %v539, %v678
  %v680 = vpop.f32.mrf.mxu0
  %v681 = vpop.f32.mrf.mxu0
  %v682 = vadd.f32 %v539, %v681
  %v683 = vpop.f32.mrf.mxu0
  %684 = vmatprep.mubr.bf16.mxu0 %v493
  %685 = vmatmul.mubr.bf16.gmra.mxu0 %v492
  %v686 = vpop.f32.mrf.mxu0
  %v687 = vadd.f32 %v539, %v686
  %v688 = vpop.f32.mrf.mxu0
  %v689 = vpop.f32.mrf.mxu0
  %v690 = vadd.f32 %v539, %v689
  %v691 = vpop.f32.mrf.mxu0
  %692 = vmatprep.mubr.bf16.mxu0 %v495
  %693 = vmatmul.mubr.bf16.gmra.mxu0 %v494
  %v694 = vpop.f32.mrf.mxu0
  %v695 = vadd.f32 %v539, %v694
  %v696 = vpop.f32.mrf.mxu0
  %v697 = vpop.f32.mrf.mxu0
  %v698 = vadd.f32 %v539, %v697
  %v699 = vpop.f32.mrf.mxu0
  %700 = vmatprep.mubr.bf16.mxu0 %v497
  %701 = vmatmul.mubr.bf16.gmra.mxu0 %v496
  %v702 = vpop.f32.mrf.mxu0
  %v703 = vadd.f32 %v539, %v702
  %v704 = vpop.f32.mrf.mxu0
  %v705 = vpop.f32.mrf.mxu0
  %v706 = vadd.f32 %v539, %v705
  %v707 = vpop.f32.mrf.mxu0
  %708 = vmatprep.mubr.bf16.mxu0 %v499
  %709 = vmatmul.mubr.bf16.gmra.mxu0 %v498
  %v710 = vpop.f32.mrf.mxu0
  %v711 = vadd.f32 %v539, %v710
  %v712 = vpop.f32.mrf.mxu0
  %v713 = vpop.f32.mrf.mxu0
  %v714 = vadd.f32 %v539, %v713
  %v715 = vpop.f32.mrf.mxu0
  %716 = vmatprep.mubr.bf16.mxu0 %v501
  %717 = vmatmul.mubr.bf16.gmra.mxu0 %v500
  %v718 = vpop.f32.mrf.mxu0
  %v719 = vadd.f32 %v539, %v718
  %v720 = vpop.f32.mrf.mxu0
  %v721 = vpop.f32.mrf.mxu0
  %v722 = vadd.f32 %v539, %v721
  %v723 = vpop.f32.mrf.mxu0
  %724 = vmatprep.mubr.bf16.mxu0 %v503
  %725 = vmatmul.mubr.bf16.gmra.mxu0 %v502
  %v726 = vpop.f32.mrf.mxu0
  %v727 = vadd.f32 %v539, %v726
  %v728 = vpop.f32.mrf.mxu0
  %v729 = vpop.f32.mrf.mxu0
  %v730 = vadd.f32 %v539, %v729
  %v731 = vpop.f32.mrf.mxu0
  %732 = vdwg.mxu0
  %vm733 = vcmp.gt.f32.partialorder %v671, 0.0
  %vm734 = vcmp.gt.f32.partialorder %v674, 0.0
  %vm735 = vcmp.gt.f32.partialorder %v679, 0.0
  %vm736 = vcmp.gt.f32.partialorder %v682, 0.0
  %vm737 = vcmp.gt.f32.partialorder %v687, 0.0
  %vm738 = vcmp.gt.f32.partialorder %v690, 0.0
  %vm739 = vcmp.gt.f32.partialorder %v695, 0.0
  %vm740 = vcmp.gt.f32.partialorder %v698, 0.0
  %vm741 = vcmp.gt.f32.partialorder %v703, 0.0
  %vm742 = vcmp.gt.f32.partialorder %v706, 0.0
  %vm743 = vcmp.gt.f32.partialorder %v711, 0.0
  %vm744 = vcmp.gt.f32.partialorder %v714, 0.0
  %vm745 = vcmp.gt.f32.partialorder %v719, 0.0
  %vm746 = vcmp.gt.f32.partialorder %v722, 0.0
  %vm747 = vcmp.gt.f32.partialorder %v727, 0.0
  %vm748 = vcmp.gt.f32.partialorder %v730, 0.0
  %v749 = vmin.f32 %v671, 0.0
  %v750 = vmin.f32 %v674, 0.0
  %v751 = vmin.f32 %v679, 0.0
  %v752 = vmin.f32 %v682, 0.0
  %v753 = vmin.f32 %v687, 0.0
  %v754 = vmin.f32 %v690, 0.0
  %v755 = vmin.f32 %v695, 0.0
  %v756 = vmin.f32 %v698, 0.0
  %v757 = vmin.f32 %v703, 0.0
  %v758 = vmin.f32 %v706, 0.0
  %v759 = vmin.f32 %v711, 0.0
  %v760 = vmin.f32 %v714, 0.0
  %v761 = vmin.f32 %v719, 0.0
  %v762 = vmin.f32 %v722, 0.0
  %v763 = vmin.f32 %v727, 0.0
  %v764 = vmin.f32 %v730, 0.0
  %v765 = vmul.f32 %v749, 1.442695
  %v766 = vpow.pop %v765
  %v767 = vmul.f32 %v750, 1.442695
  %v768 = vpow.pop %v767
  %v769 = vmul.f32 %v751, 1.442695
  %v770 = vpow.pop %v769
  %v771 = vmul.f32 %v752, 1.442695
  %v772 = vpow.pop %v771
  %v773 = vmul.f32 %v753, 1.442695
  %v774 = vpow.pop %v773
  %v775 = vmul.f32 %v754, 1.442695
  %v776 = vpow.pop %v775
  %v777 = vmul.f32 %v755, 1.442695
  %v778 = vpow.pop %v777
  %v779 = vmul.f32 %v756, 1.442695
  %v780 = vpow.pop %v779
  %v781 = vmul.f32 %v757, 1.442695
  %v782 = vpow.pop %v781
  %v783 = vmul.f32 %v758, 1.442695
  %v784 = vpow.pop %v783
  %v785 = vmul.f32 %v759, 1.442695
  %v786 = vpow.pop %v785
  %v787 = vmul.f32 %v760, 1.442695
  %v788 = vpow.pop %v787
  %v789 = vmul.f32 %v761, 1.442695
  %v790 = vpow.pop %v789
  %v791 = vmul.f32 %v762, 1.442695
  %v792 = vpow.pop %v791
  %v793 = vmul.f32 %v763, 1.442695
  %v794 = vpow.pop %v793
  %v795 = vmul.f32 %v764, 1.442695
  %v796 = vpow.pop %v795
  %v797 = vsub.f32 %v766, 1.0
  %v798 = vsub.f32 %v768, 1.0
  %v799 = vsub.f32 %v770, 1.0
  %v800 = vsub.f32 %v772, 1.0
  %v801 = vsub.f32 %v774, 1.0
  %v802 = vsub.f32 %v776, 1.0
  %v803 = vsub.f32 %v778, 1.0
  %v804 = vsub.f32 %v780, 1.0
  %v805 = vsub.f32 %v782, 1.0
  %v806 = vsub.f32 %v784, 1.0
  %v807 = vsub.f32 %v786, 1.0
  %v808 = vsub.f32 %v788, 1.0
  %v809 = vsub.f32 %v790, 1.0
  %v810 = vsub.f32 %v792, 1.0
  %v811 = vsub.f32 %v794, 1.0
  %v812 = vsub.f32 %v796, 1.0
  %v813 = vsel %vm733, %v671, %v797
  %v814 = vsel %vm734, %v674, %v798
  %v815 = vsel %vm735, %v679, %v799
  %v816 = vsel %vm736, %v682, %v800
  %v817 = vsel %vm737, %v687, %v801
  %v818 = vsel %vm738, %v690, %v802
  %v819 = vsel %vm739, %v695, %v803
  %v820 = vsel %vm740, %v698, %v804
  %v821 = vsel %vm741, %v703, %v805
  %v822 = vsel %vm742, %v706, %v806
  %v823 = vsel %vm743, %v711, %v807
  %v824 = vsel %vm744, %v714, %v808
  %v825 = vsel %vm745, %v719, %v809
  %v826 = vsel %vm746, %v722, %v810
  %v827 = vsel %vm747, %v727, %v811
  %v828 = vsel %vm748, %v730, %v812
  %v829 = vpack.c.bf16 %v814, %v813
  %v830 = vpack.c.bf16 %v816, %v815
  %v831 = vpack.c.bf16 %v818, %v817
  %v832 = vpack.c.bf16 %v820, %v819
  %v833 = vpack.c.bf16 %v822, %v821
  %v834 = vpack.c.bf16 %v824, %v823
  %v835 = vpack.c.bf16 %v826, %v825
  %v836 = vpack.c.bf16 %v828, %v827
  %v837 = vld [vmem:[%s5] sm:$0xf]
  %v838 = vld [vmem:[%s5 + $0x4] sm:$0xf]
  %v839 = vld [vmem:[%s5 + $0x8] sm:$0xf]
  %v840 = vld [vmem:[%s5 + $0xc] sm:$0xf]
  %v841 = vld [vmem:[%s5 + $0x10] sm:$0xf]
  %v842 = vld [vmem:[%s5 + $0x14] sm:$0xf]
  %v843 = vld [vmem:[%s5 + $0x18] sm:$0xf]
  %v844 = vld [vmem:[%s5 + $0x1c] sm:$0xf]
  %v845 = vld [vmem:[%s5 + $0x20] sm:$0xf]
  %v846 = vld [vmem:[%s5 + $0x24] sm:$0xf]
  %v847 = vld [vmem:[%s5 + $0x28] sm:$0xf]
  %v848 = vld [vmem:[%s5 + $0x2c] sm:$0xf]
  %v849 = vld [vmem:[%s5 + $0x30] sm:$0xf]
  %v850 = vld [vmem:[%s5 + $0x34] sm:$0xf]
  %v851 = vld [vmem:[%s5 + $0x38] sm:$0xf]
  %v852 = vld [vmem:[%s5 + $0x3c] sm:$0xf]
  %v853 = vlaneseq
  %v854 = vshrl.u32 %v853, 7
  %v855 = vsub.s32 2, %v854
  %v856 = vrot.slane %v24, %v855
  %v873 = vunpack.c.l.b16 %v837
  %v874 = vunpack.c.l.b16 %v838
  %v875 = vunpack.c.l.b16 %v839
  %v876 = vunpack.c.l.b16 %v840
  %v877 = vunpack.c.l.b16 %v841
  %v878 = vunpack.c.l.b16 %v842
  %v879 = vunpack.c.l.b16 %v843
  %v880 = vunpack.c.l.b16 %v844
  %v881 = vunpack.c.l.b16 %v845
  %v882 = vunpack.c.l.b16 %v846
  %v883 = vunpack.c.l.b16 %v847
  %v884 = vunpack.c.l.b16 %v848
  %v885 = vunpack.c.l.b16 %v849
  %v886 = vunpack.c.l.b16 %v850
  %v887 = vunpack.c.l.b16 %v851
  %v888 = vunpack.c.l.b16 %v852
  %v889 = vpack.c.b16 %v874, %v873
  %v890 = vpack.c.b16 %v876, %v875
  %v891 = vpack.c.b16 %v878, %v877
  %v892 = vpack.c.b16 %v880, %v879
  %v893 = vpack.c.b16 %v882, %v881
  %v894 = vpack.c.b16 %v884, %v883
  %v895 = vpack.c.b16 %v886, %v885
  %v896 = vpack.c.b16 %v888, %v887
  %905 = vmatprep.subr.bf16.mxu0 0
  %906 = vmatpush1.bf16.msra.mxu0 %v896
  %907 = vmatprep.subr.bf16.mxu0 0
  %908 = vmatpush1.bf16.msra.mxu0 %v895
  %909 = vmatprep.subr.bf16.mxu0 0
  %910 = vmatpush1.bf16.msra.mxu0 %v894
  %911 = vmatprep.subr.bf16.mxu0 0
  %912 = vmatpush1.bf16.msra.mxu0 %v893
  %913 = vmatprep.subr.bf16.mxu0 0
  %914 = vmatpush1.bf16.msra.mxu0 %v892
  %915 = vmatprep.subr.bf16.mxu0 0
  %916 = vmatpush1.bf16.msra.mxu0 %v891
  %917 = vmatprep.subr.bf16.mxu0 0
  %918 = vmatpush1.bf16.msra.mxu0 %v890
  %919 = vmatprep.subr.bf16.mxu0 0
  %920 = vmatpush1.bf16.msra.mxu0 %v889
  %921 = vmatprep.subr.bf16.mxu0 0
  %922 = vmatpush2.bf16.msra.mxu0 0
  %923 = vmatprep.subr.bf16.mxu0 0
  %924 = vmatpush2.bf16.msra.mxu0 0
  %925 = vmatprep.subr.bf16.mxu0 0
  %926 = vmatpush2.bf16.msra.mxu0 0
  %927 = vmatprep.subr.bf16.mxu0 0
  %928 = vmatpush2.bf16.msra.mxu0 0
  %929 = vmatprep.subr.bf16.mxu0 0
  %930 = vmatpush2.bf16.msra.mxu0 0
  %931 = vmatprep.subr.bf16.mxu0 0
  %932 = vmatpush2.bf16.msra.mxu0 0
  %933 = vmatprep.subr.bf16.mxu0 0
  %934 = vmatpush2.bf16.msra.mxu0 0
  %935 = vmatprep.subr.bf16.mxu0 0
  %936 = vmatpush2.bf16.msra.mxu0 0
  %937 = vmatprep.mubr.bf16.mxu0 0
  %938 = vmatmul.mubr.bf16.gmra.mxu0 %v829
  %v939 = vpop.f32.mrf.mxu0
  %v940 = vadd.f32 %v856, %v939
  %v941 = vpop.f32.mrf.mxu0
  %v942 = vpop.f32.mrf.mxu0
  %v943 = vadd.f32 %v856, %v942
  %v944 = vpop.f32.mrf.mxu0
  %945 = vmatprep.mubr.bf16.mxu0 0
  %946 = vmatmul.mubr.bf16.gmra.mxu0 %v830
  %v947 = vpop.f32.mrf.mxu0
  %v948 = vadd.f32 %v856, %v947
  %v949 = vpop.f32.mrf.mxu0
  %v950 = vpop.f32.mrf.mxu0
  %v951 = vadd.f32 %v856, %v950
  %v952 = vpop.f32.mrf.mxu0
  %953 = vmatprep.mubr.bf16.mxu0 0
  %954 = vmatmul.mubr.bf16.gmra.mxu0 %v831
  %v955 = vpop.f32.mrf.mxu0
  %v956 = vadd.f32 %v856, %v955
  %v957 = vpop.f32.mrf.mxu0
  %v958 = vpop.f32.mrf.mxu0
  %v959 = vadd.f32 %v856, %v958
  %v960 = vpop.f32.mrf.mxu0
  %961 = vmatprep.mubr.bf16.mxu0 0
  %962 = vmatmul.mubr.bf16.gmra.mxu0 %v832
  %v963 = vpop.f32.mrf.mxu0
  %v964 = vadd.f32 %v856, %v963
  %v965 = vpop.f32.mrf.mxu0
  %v966 = vpop.f32.mrf.mxu0
  %v967 = vadd.f32 %v856, %v966
  %v968 = vpop.f32.mrf.mxu0
  %969 = vmatprep.mubr.bf16.mxu0 0
  %970 = vmatmul.mubr.bf16.gmra.mxu0 %v833
  %v971 = vpop.f32.mrf.mxu0
  %v972 = vadd.f32 %v856, %v971
  %v973 = vpop.f32.mrf.mxu0
  %v974 = vpop.f32.mrf.mxu0
  %v975 = vadd.f32 %v856, %v974
  %v976 = vpop.f32.mrf.mxu0
  %977 = vmatprep.mubr.bf16.mxu0 0
  %978 = vmatmul.mubr.bf16.gmra.mxu0 %v834
  %v979 = vpop.f32.mrf.mxu0
  %v980 = vadd.f32 %v856, %v979
  %v981 = vpop.f32.mrf.mxu0
  %v982 = vpop.f32.mrf.mxu0
  %v983 = vadd.f32 %v856, %v982
  %v984 = vpop.f32.mrf.mxu0
  %985 = vmatprep.mubr.bf16.mxu0 0
  %986 = vmatmul.mubr.bf16.gmra.mxu0 %v835
  %v987 = vpop.f32.mrf.mxu0
  %v988 = vadd.f32 %v856, %v987
  %v989 = vpop.f32.mrf.mxu0
  %v990 = vpop.f32.mrf.mxu0
  %v991 = vadd.f32 %v856, %v990
  %v992 = vpop.f32.mrf.mxu0
  %993 = vmatprep.mubr.bf16.mxu0 0
  %994 = vmatmul.mubr.bf16.gmra.mxu0 %v836
  %v995 = vpop.f32.mrf.mxu0
  %v996 = vadd.f32 %v856, %v995
  %v997 = vpop.f32.mrf.mxu0
  %v998 = vpop.f32.mrf.mxu0
  %v999 = vadd.f32 %v856, %v998
  %v1000 = vpop.f32.mrf.mxu0
  %1001 = vdwg.mxu0
  %vm1002 = vcmp.gt.f32.partialorder %v940, 0.0
  %vm1003 = vcmp.gt.f32.partialorder %v943, 0.0
  %vm1004 = vcmp.gt.f32.partialorder %v948, 0.0
  %vm1005 = vcmp.gt.f32.partialorder %v951, 0.0
  %vm1006 = vcmp.gt.f32.partialorder %v956, 0.0
  %vm1007 = vcmp.gt.f32.partialorder %v959, 0.0
  %vm1008 = vcmp.gt.f32.partialorder %v964, 0.0
  %vm1009 = vcmp.gt.f32.partialorder %v967, 0.0
  %vm1010 = vcmp.gt.f32.partialorder %v972, 0.0
  %vm1011 = vcmp.gt.f32.partialorder %v975, 0.0
  %vm1012 = vcmp.gt.f32.partialorder %v980, 0.0
  %vm1013 = vcmp.gt.f32.partialorder %v983, 0.0
  %vm1014 = vcmp.gt.f32.partialorder %v988, 0.0
  %vm1015 = vcmp.gt.f32.partialorder %v991, 0.0
  %vm1016 = vcmp.gt.f32.partialorder %v996, 0.0
  %vm1017 = vcmp.gt.f32.partialorder %v999, 0.0
  %v1018 = vmin.f32 %v940, 0.0
  %v1019 = vmin.f32 %v943, 0.0
  %v1020 = vmin.f32 %v948, 0.0
  %v1021 = vmin.f32 %v951, 0.0
  %v1022 = vmin.f32 %v956, 0.0
  %v1023 = vmin.f32 %v959, 0.0
  %v1024 = vmin.f32 %v964, 0.0
  %v1025 = vmin.f32 %v967, 0.0
  %v1026 = vmin.f32 %v972, 0.0
  %v1027 = vmin.f32 %v975, 0.0
  %v1028 = vmin.f32 %v980, 0.0
  %v1029 = vmin.f32 %v983, 0.0
  %v1030 = vmin.f32 %v988, 0.0
  %v1031 = vmin.f32 %v991, 0.0
  %v1032 = vmin.f32 %v996, 0.0
  %v1033 = vmin.f32 %v999, 0.0
  %v1034 = vmul.f32 %v1018, 1.442695
  %v1035 = vpow.pop %v1034
  %v1036 = vmul.f32 %v1019, 1.442695
  %v1037 = vpow.pop %v1036
  %v1038 = vmul.f32 %v1020, 1.442695
  %v1039 = vpow.pop %v1038
  %v1040 = vmul.f32 %v1021, 1.442695
  %v1041 = vpow.pop %v1040
  %v1042 = vmul.f32 %v1022, 1.442695
  %v1043 = vpow.pop %v1042
  %v1044 = vmul.f32 %v1023, 1.442695
  %v1045 = vpow.pop %v1044
  %v1046 = vmul.f32 %v1024, 1.442695
  %v1047 = vpow.pop %v1046
  %v1048 = vmul.f32 %v1025, 1.442695
  %v1049 = vpow.pop %v1048
  %v1050 = vmul.f32 %v1026, 1.442695
  %v1051 = vpow.pop %v1050
  %v1052 = vmul.f32 %v1027, 1.442695
  %v1053 = vpow.pop %v1052
  %v1054 = vmul.f32 %v1028, 1.442695
  %v1055 = vpow.pop %v1054
  %v1056 = vmul.f32 %v1029, 1.442695
  %v1057 = vpow.pop %v1056
  %v1058 = vmul.f32 %v1030, 1.442695
  %v1059 = vpow.pop %v1058
  %v1060 = vmul.f32 %v1031, 1.442695
  %v1061 = vpow.pop %v1060
  %v1062 = vmul.f32 %v1032, 1.442695
  %v1063 = vpow.pop %v1062
  %v1064 = vmul.f32 %v1033, 1.442695
  %v1065 = vpow.pop %v1064
  %v1066 = vsub.f32 %v1035, 1.0
  %v1067 = vsub.f32 %v1037, 1.0
  %v1068 = vsub.f32 %v1039, 1.0
  %v1069 = vsub.f32 %v1041, 1.0
  %v1070 = vsub.f32 %v1043, 1.0
  %v1071 = vsub.f32 %v1045, 1.0
  %v1072 = vsub.f32 %v1047, 1.0
  %v1073 = vsub.f32 %v1049, 1.0
  %v1074 = vsub.f32 %v1051, 1.0
  %v1075 = vsub.f32 %v1053, 1.0
  %v1076 = vsub.f32 %v1055, 1.0
  %v1077 = vsub.f32 %v1057, 1.0
  %v1078 = vsub.f32 %v1059, 1.0
  %v1079 = vsub.f32 %v1061, 1.0
  %v1080 = vsub.f32 %v1063, 1.0
  %v1081 = vsub.f32 %v1065, 1.0
  %v1082 = vsel %vm1002, %v940, %v1066
  %v1083 = vsel %vm1003, %v943, %v1067
  %v1084 = vsel %vm1004, %v948, %v1068
  %v1085 = vsel %vm1005, %v951, %v1069
  %v1086 = vsel %vm1006, %v956, %v1070
  %v1087 = vsel %vm1007, %v959, %v1071
  %v1088 = vsel %vm1008, %v964, %v1072
  %v1089 = vsel %vm1009, %v967, %v1073
  %v1090 = vsel %vm1010, %v972, %v1074
  %v1091 = vsel %vm1011, %v975, %v1075
  %v1092 = vsel %vm1012, %v980, %v1076
  %v1093 = vsel %vm1013, %v983, %v1077
  %v1094 = vsel %vm1014, %v988, %v1078
  %v1095 = vsel %vm1015, %v991, %v1079
  %v1096 = vsel %vm1016, %v996, %v1080
  %v1097 = vsel %vm1017, %v999, %v1081
  %v1098 = vlaneseq
  %v1099 = vshrl.u32 %v1098, 7
  %v1100 = vsub.s32 3, %v1099
  %v1101 = vrot.slane %v24, %v1100
  %v1102 = vmul.f32 %v1082, %v1101
  %v1103 = vmul.f32 %v1083, %v1101
  %v1104 = vmul.f32 %v1084, %v1101
  %v1105 = vmul.f32 %v1085, %v1101
  %v1106 = vmul.f32 %v1086, %v1101
  %v1107 = vmul.f32 %v1087, %v1101
  %v1108 = vmul.f32 %v1088, %v1101
  %v1109 = vmul.f32 %v1089, %v1101
  %v1110 = vmul.f32 %v1090, %v1101
  %v1111 = vmul.f32 %v1091, %v1101
  %v1112 = vmul.f32 %v1092, %v1101
  %v1113 = vmul.f32 %v1093, %v1101
  %v1114 = vmul.f32 %v1094, %v1101
  %v1115 = vmul.f32 %v1095, %v1101
  %v1116 = vmul.f32 %v1096, %v1101
  %v1117 = vmul.f32 %v1097, %v1101
  %vm1118 = vcmask 523264
  %v1119 = vsel %vm1118, %v1102, 0.0
  %1120 = vadd.xlane.f32.xlu0 %v1119
  %v1121 = vpop.xlane.xlu0 %1120
  %v1122 = vsel %vm1118, %v1103, 0.0
  %1123 = vadd.xlane.f32.xlu0 %v1122
  %v1124 = vpop.xlane.xlu0 %1123
  %v1125 = vsel %vm1118, %v1104, 0.0
  %1126 = vadd.xlane.f32.xlu0 %v1125
  %v1127 = vpop.xlane.xlu0 %1126
  %v1128 = vsel %vm1118, %v1105, 0.0
  %1129 = vadd.xlane.f32.xlu0 %v1128
  %v1130 = vpop.xlane.xlu0 %1129
  %v1131 = vsel %vm1118, %v1106, 0.0
  %1132 = vadd.xlane.f32.xlu0 %v1131
  %v1133 = vpop.xlane.xlu0 %1132
  %v1134 = vsel %vm1118, %v1107, 0.0
  %1135 = vadd.xlane.f32.xlu0 %v1134
  %v1136 = vpop.xlane.xlu0 %1135
  %v1137 = vsel %vm1118, %v1108, 0.0
  %1138 = vadd.xlane.f32.xlu0 %v1137
  %v1139 = vpop.xlane.xlu0 %1138
  %v1140 = vsel %vm1118, %v1109, 0.0
  %1141 = vadd.xlane.f32.xlu0 %v1140
  %v1142 = vpop.xlane.xlu0 %1141
  %v1143 = vsel %vm1118, %v1110, 0.0
  %1144 = vadd.xlane.f32.xlu0 %v1143
  %v1145 = vpop.xlane.xlu0 %1144
  %v1146 = vsel %vm1118, %v1111, 0.0
  %1147 = vadd.xlane.f32.xlu0 %v1146
  %v1148 = vpop.xlane.xlu0 %1147
  %v1149 = vsel %vm1118, %v1112, 0.0
  %1150 = vadd.xlane.f32.xlu0 %v1149
  %v1151 = vpop.xlane.xlu0 %1150
  %v1152 = vsel %vm1118, %v1113, 0.0
  %1153 = vadd.xlane.f32.xlu0 %v1152
  %v1154 = vpop.xlane.xlu0 %1153
  %v1155 = vsel %vm1118, %v1114, 0.0
  %1156 = vadd.xlane.f32.xlu0 %v1155
  %v1157 = vpop.xlane.xlu0 %1156
  %v1158 = vsel %vm1118, %v1115, 0.0
  %1159 = vadd.xlane.f32.xlu0 %v1158
  %v1160 = vpop.xlane.xlu0 %1159
  %v1161 = vsel %vm1118, %v1116, 0.0
  %1162 = vadd.xlane.f32.xlu0 %v1161
  %v1163 = vpop.xlane.xlu0 %1162
  %v1164 = vsel %vm1118, %v1117, 0.0
  %1165 = vadd.xlane.f32.xlu0 %v1164
  %v1166 = vpop.xlane.xlu0 %1165
  %v1167 = vstv %s27
  %v1168 = vadd.f32 %v1121, %v1167
  %v1169 = vadd.f32 %v1124, %v1167
  %v1170 = vadd.f32 %v1127, %v1167
  %v1171 = vadd.f32 %v1130, %v1167
  %v1172 = vadd.f32 %v1133, %v1167
  %v1173 = vadd.f32 %v1136, %v1167
  %v1174 = vadd.f32 %v1139, %v1167
  %v1175 = vadd.f32 %v1142, %v1167
  %v1176 = vadd.f32 %v1145, %v1167
  %v1177 = vadd.f32 %v1148, %v1167
  %v1178 = vadd.f32 %v1151, %v1167
  %v1179 = vadd.f32 %v1154, %v1167
  %v1180 = vadd.f32 %v1157, %v1167
  %v1181 = vadd.f32 %v1160, %v1167
  %v1182 = vadd.f32 %v1163, %v1167
  %v1183 = vadd.f32 %v1166, %v1167
  %v1184 = vstv %s29
  %v1185 = vmul.f32 %v1184, 1.442695
  %v1186 = vpow.pop %v1185
  %s1187 = vtos %v1186
  %v1188 = vld [vmem:[%s1] sm:$0xff]
  %v1189 = vld [vmem:[%s1 + $0x8] sm:$0xff]
  %v1190 = vld [vmem:[%s1 + $0x10] sm:$0xff]
  %v1191 = vld [vmem:[%s1 + $0x18] sm:$0xff]
  %v1192 = vld [vmem:[%s1 + $0x20] sm:$0xff]
  %v1193 = vld [vmem:[%s1 + $0x28] sm:$0xff]
  %v1194 = vld [vmem:[%s1 + $0x30] sm:$0xff]
  %v1195 = vld [vmem:[%s1 + $0x38] sm:$0xff]
  %v1196 = vld [vmem:[%s1 + $0x40] sm:$0xff]
  %v1197 = vld [vmem:[%s1 + $0x48] sm:$0xff]
  %v1198 = vld [vmem:[%s1 + $0x50] sm:$0xff]
  %v1199 = vld [vmem:[%s1 + $0x58] sm:$0xff]
  %v1200 = vld [vmem:[%s1 + $0x60] sm:$0xff]
  %v1201 = vld [vmem:[%s1 + $0x68] sm:$0xff]
  %v1202 = vld [vmem:[%s1 + $0x70] sm:$0xff]
  %v1203 = vld [vmem:[%s1 + $0x78] sm:$0xff]
  %v1204 = vstv %s1187
  %v1205 = vmul.f32 %v1204, %v1188
  %v1206 = vmul.f32 %v1204, %v1189
  %v1207 = vmul.f32 %v1204, %v1190
  %v1208 = vmul.f32 %v1204, %v1191
  %v1209 = vmul.f32 %v1204, %v1192
  %v1210 = vmul.f32 %v1204, %v1193
  %v1211 = vmul.f32 %v1204, %v1194
  %v1212 = vmul.f32 %v1204, %v1195
  %v1213 = vmul.f32 %v1204, %v1196
  %v1214 = vmul.f32 %v1204, %v1197
  %v1215 = vmul.f32 %v1204, %v1198
  %v1216 = vmul.f32 %v1204, %v1199
  %v1217 = vmul.f32 %v1204, %v1200
  %v1218 = vmul.f32 %v1204, %v1201
  %v1219 = vmul.f32 %v1204, %v1202
  %v1220 = vmul.f32 %v1204, %v1203
  %v1221 = vadd.f32 %v1168, %v1205
  %v1222 = vadd.f32 %v1169, %v1206
  %v1223 = vadd.f32 %v1170, %v1207
  %v1224 = vadd.f32 %v1171, %v1208
  %v1225 = vadd.f32 %v1172, %v1209
  %v1226 = vadd.f32 %v1173, %v1210
  %v1227 = vadd.f32 %v1174, %v1211
  %v1228 = vadd.f32 %v1175, %v1212
  %v1229 = vadd.f32 %v1176, %v1213
  %v1230 = vadd.f32 %v1177, %v1214
  %v1231 = vadd.f32 %v1178, %v1215
  %v1232 = vadd.f32 %v1179, %v1216
  %v1233 = vadd.f32 %v1180, %v1217
  %v1234 = vadd.f32 %v1181, %v1218
  %v1235 = vadd.f32 %v1182, %v1219
  %v1236 = vadd.f32 %v1183, %v1220
  %v1237 = vmax.f32 %v1221, -1.0
  %v1238 = vmax.f32 %v1222, -1.0
  %v1239 = vmax.f32 %v1223, -1.0
  %v1240 = vmax.f32 %v1224, -1.0
  %v1241 = vmax.f32 %v1225, -1.0
  %v1242 = vmax.f32 %v1226, -1.0
  %v1243 = vmax.f32 %v1227, -1.0
  %v1244 = vmax.f32 %v1228, -1.0
  %v1245 = vmax.f32 %v1229, -1.0
  %v1246 = vmax.f32 %v1230, -1.0
  %v1247 = vmax.f32 %v1231, -1.0
  %v1248 = vmax.f32 %v1232, -1.0
  %v1249 = vmax.f32 %v1233, -1.0
  %v1250 = vmax.f32 %v1234, -1.0
  %v1251 = vmax.f32 %v1235, -1.0
  %v1252 = vmax.f32 %v1236, -1.0
  %v1253 = vmin.f32 %v1237, 1.0
  %v1254 = vmin.f32 %v1238, 1.0
  %v1255 = vmin.f32 %v1239, 1.0
  %v1256 = vmin.f32 %v1240, 1.0
  %v1257 = vmin.f32 %v1241, 1.0
  %v1258 = vmin.f32 %v1242, 1.0
  %v1259 = vmin.f32 %v1243, 1.0
  %v1260 = vmin.f32 %v1244, 1.0
  %v1261 = vmin.f32 %v1245, 1.0
  %v1262 = vmin.f32 %v1246, 1.0
  %v1263 = vmin.f32 %v1247, 1.0
  %v1264 = vmin.f32 %v1248, 1.0
  %v1265 = vmin.f32 %v1249, 1.0
  %v1266 = vmin.f32 %v1250, 1.0
  %v1267 = vmin.f32 %v1251, 1.0
  %v1268 = vmin.f32 %v1252, 1.0
  %v1269 = vadd.f32 %v1253, 1.0
  %v1270 = vadd.f32 %v1254, 1.0
  %v1271 = vadd.f32 %v1255, 1.0
  %v1272 = vadd.f32 %v1256, 1.0
  %v1273 = vadd.f32 %v1257, 1.0
  %v1274 = vadd.f32 %v1258, 1.0
  %v1275 = vadd.f32 %v1259, 1.0
  %v1276 = vadd.f32 %v1260, 1.0
  %v1277 = vadd.f32 %v1261, 1.0
  %v1278 = vadd.f32 %v1262, 1.0
  %v1279 = vadd.f32 %v1263, 1.0
  %v1280 = vadd.f32 %v1264, 1.0
  %v1281 = vadd.f32 %v1265, 1.0
  %v1282 = vadd.f32 %v1266, 1.0
  %v1283 = vadd.f32 %v1267, 1.0
  %v1284 = vadd.f32 %v1268, 1.0
  %v1285 = vmul.f32 %v1269, 1.55
  %v1286 = vmul.f32 %v1270, 1.55
  %v1287 = vmul.f32 %v1271, 1.55
  %v1288 = vmul.f32 %v1272, 1.55
  %v1289 = vmul.f32 %v1273, 1.55
  %v1290 = vmul.f32 %v1274, 1.55
  %v1291 = vmul.f32 %v1275, 1.55
  %v1292 = vmul.f32 %v1276, 1.55
  %v1293 = vmul.f32 %v1277, 1.55
  %v1294 = vmul.f32 %v1278, 1.55
  %v1295 = vmul.f32 %v1279, 1.55
  %v1296 = vmul.f32 %v1280, 1.55
  %v1297 = vmul.f32 %v1281, 1.55
  %v1298 = vmul.f32 %v1282, 1.55
  %v1299 = vmul.f32 %v1283, 1.55
  %v1300 = vmul.f32 %v1284, 1.55
  %v1301 = vadd.f32 %v1285, -0.1
  %v1302 = vadd.f32 %v1286, -0.1
  %v1303 = vadd.f32 %v1287, -0.1
  %v1304 = vadd.f32 %v1288, -0.1
  %v1305 = vadd.f32 %v1289, -0.1
  %v1306 = vadd.f32 %v1290, -0.1
  %v1307 = vadd.f32 %v1291, -0.1
  %v1308 = vadd.f32 %v1292, -0.1
  %v1309 = vadd.f32 %v1293, -0.1
  %v1310 = vadd.f32 %v1294, -0.1
  %v1311 = vadd.f32 %v1295, -0.1
  %v1312 = vadd.f32 %v1296, -0.1
  %v1313 = vadd.f32 %v1297, -0.1
  %v1314 = vadd.f32 %v1298, -0.1
  %v1315 = vadd.f32 %v1299, -0.1
  %v1316 = vadd.f32 %v1300, -0.1
  %vm1317 = vcmask 7168
  %1318 = vst.msk [vmem:[%s6] sm:$0xff] %vm1317, %v1301
  %1319 = vst.msk [vmem:[%s6 + $0x8] sm:$0xff] %vm1317, %v1302
  %1320 = vst.msk [vmem:[%s6 + $0x10] sm:$0xff] %vm1317, %v1303
  %1321 = vst.msk [vmem:[%s6 + $0x18] sm:$0xff] %vm1317, %v1304
  %1322 = vst.msk [vmem:[%s6 + $0x20] sm:$0xff] %vm1317, %v1305
  %1323 = vst.msk [vmem:[%s6 + $0x28] sm:$0xff] %vm1317, %v1306
  %1324 = vst.msk [vmem:[%s6 + $0x30] sm:$0xff] %vm1317, %v1307
  %1325 = vst.msk [vmem:[%s6 + $0x38] sm:$0xff] %vm1317, %v1308
  %1326 = vst.msk [vmem:[%s6 + $0x40] sm:$0xff] %vm1317, %v1309
  %1327 = vst.msk [vmem:[%s6 + $0x48] sm:$0xff] %vm1317, %v1310
  %1328 = vst.msk [vmem:[%s6 + $0x50] sm:$0xff] %vm1317, %v1311
  %1329 = vst.msk [vmem:[%s6 + $0x58] sm:$0xff] %vm1317, %v1312
  %1330 = vst.msk [vmem:[%s6 + $0x60] sm:$0xff] %vm1317, %v1313
  %1331 = vst.msk [vmem:[%s6 + $0x68] sm:$0xff] %vm1317, %v1314
  %1332 = vst.msk [vmem:[%s6 + $0x70] sm:$0xff] %vm1317, %v1315
  %1333 = vst.msk [vmem:[%s6 + $0x78] sm:$0xff] %vm1317, %v1316
  // Predicated region
  $region26: #{_get_action.1} parent=0 // pred_check
    _
  $region27: #{_get_action.1} parent=0 // pred_check_branch
    %1335 = sbr.rel (0) target = $region29
  $region28: #{_get_action.1} parent=0 // pred_region
    _
  $region29: #{_get_action.1} parent=0 // pred_fallthru
    _
  // Predicated region
  $region30: #{_get_action.1} parent=0 // pred_check
    _
  $region31: #{_get_action.1} parent=0 // pred_check_branch
    %1337 = sbr.rel (0) target = $region33
  $region32: #{_get_action.1} parent=0 // pred_region
    _
  $region33: #{_get_action.1} parent=0 // pred_fallthru
    _

</llo_original>
